<compile_context>
chip_gen: v6e
topology: v6e:2x2x1
jax: 0.10.0
libtpu: 0.0.40
codegen_flags: <defaults>
</compile_context>

<pallas_src>
import functools

import jax
import jax.numpy as jnp
from jax.experimental import pallas as pl
from jax.experimental.pallas import tpu as pltpu


# ----------------------------- SSIM + L1 kernel ------------------------------
def _ssim_l1_kernel(x_ref, y_ref, gw_ref, gh_ref, l1_ref, ssim_ref):
    p, h, w = x_ref.shape
    x2 = x_ref[...].reshape(p * h, w)
    y2 = y_ref[...].reshape(p * h, w)

    # Five blur operands stacked along the sublane axis: ONE 5-piece concat.
    stacked = jnp.concatenate([x2, y2, x2 * x2, y2 * y2, x2 * y2], axis=0)    # (5PH, W)

    # Pass 1: horizontal (W) blur -- one matmul against the (W, W) band matrix.
    t = jnp.dot(stacked, gw_ref[...], preferred_element_type=jnp.float32)     # (5PH, W)

    # Pass 2: restack each (H, W) plane/operand chunk along lanes so the vertical (H)
    # blur is one matmul with N = 5*P*W (lane-dense).
    ops = jnp.concatenate([t[j * h:(j + 1) * h] for j in range(5 * p)], axis=1)  # (H, 5PW)
    mu = jnp.dot(gh_ref[...], ops, preferred_element_type=jnp.float32)           # (H, 5PW)

    pw = p * w
    mu_x = mu[:, 0 * pw:1 * pw]
    mu_y = mu[:, 1 * pw:2 * pw]
    mu_xx = mu[:, 2 * pw:3 * pw]
    mu_yy = mu[:, 3 * pw:4 * pw]
    mu_xy = mu[:, 4 * pw:5 * pw]

    mu_x2 = mu_x * mu_x
    mu_y2 = mu_y * mu_y
    mu_xym = mu_x * mu_y
    sig_x = mu_xx - mu_x2
    sig_y = mu_yy - mu_y2
    sig_xy = mu_xy - mu_xym

    c1 = 0.01 ** 2
    c2 = 0.03 ** 2
    num = (2.0 * mu_xym + c1) * (2.0 * sig_xy + c2)
    den = (mu_x2 + mu_y2 + c1) * (sig_x + sig_y + c2)
    smap = num * pl.reciprocal(den, approx=True)

    # Lane-dense per-step partial sums (reduced in the wrapper) -> grid stays parallel.
    l1_ref[...] = jnp.zeros(l1_ref.shape, jnp.float32) + jnp.sum(jnp.abs(x2 - y2))
    ssim_ref[...] = jnp.zeros(ssim_ref.shape, jnp.float32) + jnp.sum(smap)


def ssim_l1_sums(x_planes, y_planes, gw, gh, planes_per_step, vmem_limit):
    # x_planes, y_planes: (N, H, W) f32; gw: (W, W); gh: (H, H)
    n, h, w = x_planes.shape
    p = planes_per_step
    g_steps = n // p

    grid_spec = pltpu.PrefetchScalarGridSpec(
        num_scalar_prefetch=0,
        grid=(g_steps,),
        in_specs=[pl.BlockSpec((p, h, w), lambda i: (i, 0, 0)),
                  pl.BlockSpec((p, h, w), lambda i: (i, 0, 0)),
                  pl.BlockSpec((w, w), lambda i: (0, 0)),
                  pl.BlockSpec((h, h), lambda i: (0, 0))],
        out_specs=(pl.BlockSpec((1, 8, 128), lambda i: (i, 0, 0)),
                   pl.BlockSpec((1, 8, 128), lambda i: (i, 0, 0))),
    )

    flops = int(g_steps * (2 * (5 * p * h) * w * w + 2 * h * h * (5 * p * w)
                           + 20 * p * h * w))
    bytes_accessed = int(4 * (2 * n * h * w + h * h + w * w + 2 * g_steps * 8 * 128))

    return pl.pallas_call(
        _ssim_l1_kernel,
        out_shape=(jax.ShapeDtypeStruct((g_steps, 8, 128), jnp.float32),
                   jax.ShapeDtypeStruct((g_steps, 8, 128), jnp.float32)),
        grid_spec=grid_spec,
        compiler_params=pltpu.CompilerParams(
            dimension_semantics=("parallel",), vmem_limit_bytes=vmem_limit),
        cost_estimate=pl.CostEstimate(
            flops=flops, transcendentals=0, bytes_accessed=bytes_accessed),
    )(x_planes, y_planes, gw, gh)


# ------------------- fused, row-tiled perceptual-feature kernel --------------
def _perc_kernel(xw_ref, yw_ref, w1_ref, b1_ref, w2_ref, b2_ref, out_ref,
                 *, height, width, tr):
    # xw_ref / yw_ref: (C, (tr+4)*W) -- rows [r*tr - 2, r*tr + tr + 2) of one image
    # (flattened, pixels on the lane axis; out-of-image rows are wrapper zero-padding).
    c = xw_ref.shape[0]
    band2 = (tr + 2) * width          # layer-1 output band (rows r*tr-1 .. r*tr+tr)
    band1 = tr * width                # layer-2 output band (rows r*tr   .. r*tr+tr-1)
    r0 = pl.program_id(1) * tr

    w1 = w1_ref[...].astype(jnp.bfloat16)
    w2 = w2_ref[...].astype(jnp.bfloat16)
    b1 = b1_ref[...]
    b2 = b2_ref[...]

    def col_masks(n):
        # Horizontal zero-padding: generated in-kernel from iota, no DMA'd constant.
        col = jax.lax.broadcasted_iota(jnp.int32, (1, n), 1) % width
        left = (col != 0).astype(jnp.float32)            # needed by dx == -1 taps
        right = (col != width - 1).astype(jnp.float32)   # needed by dx == +1 taps
        return left, right

    def conv3x3_relu(a, w_r, b_r, out_len):
        # a: (cin, out_len + 2*width).  3x3 conv via 9 lane-shifted views + one matmul.
        cin = a.shape[0]
        zp = jnp.zeros((cin, 1), jnp.float32)
        ap = jnp.concatenate([zp, a, zp], axis=1)
        left, right = col_masks(out_len)
        taps = []
        for dy in (-1, 0, 1):
            for dx in (-1, 0, 1):
                s = 1 + width + dy * width + dx
                tapv = ap[:, s:s + out_len]
                if dx == -1:
                    tapv = tapv * left
                elif dx == 1:
                    tapv = tapv * right           # center taps skip the mask multiply
                taps.append(tapv)
        patches = jnp.concatenate(taps, axis=0).astype(jnp.bfloat16)   # (9*cin, out_len)
        f = jnp.dot(w_r, patches, preferred_element_type=jnp.float32) + b_r
        return jnp.maximum(f, 0.0)

    # Layer-2 vertical zero padding: zero f1 rows whose original row index is outside
    # the image (only possible on the first / last chunk).
    jj = jax.lax.broadcasted_iota(jnp.int32, (1, band2), 1) // width
    orig_row = r0 - 1 + jj
    rowmask = jnp.logical_and(orig_row >= 0, orig_row < height).astype(jnp.float32)

    def features(img):
        f1 = conv3x3_relu(img, w1, b1, band2) * rowmask    # (C1, band2), stays in VMEM
        return conv3x3_relu(f1, w2, b2, band1)             # (C2, band1)

    # x and y are processed sequentially (not lane-concatenated): same MXU time, half
    # the peak VMEM, fewer stores (important on v5e's single store slot / v7x's 64 MiB).
    fx = features(xw_ref[...])
    fy = features(yw_ref[...])
    d = fx - fy
    out_ref[...] = jnp.zeros(out_ref.shape, jnp.float32) + jnp.sum(d * d)


def _row_windows(x_nchw, tr):
    # Wrapper-side halo materialization: chunk r holds rows [r*tr - 2, r*tr + tr + 2)
    # (zero-padded at the image border).  Duplicates only 4/tr of the (small) input so
    # BlockSpec tiling stays non-overlapping and fully pipelined.
    b, c, h, w = x_nchw.shape
    n_chunks = h // tr
    xp = jnp.pad(x_nchw, ((0, 0), (0, 0), (2, 2), (0, 0)))
    wins = [xp[:, :, r * tr:r * tr + tr + 4, :] for r in range(n_chunks)]
    xw = jnp.stack(wins, axis=1)                      # (B, n_chunks, C, tr+4, W)
    return xw.reshape(b, n_chunks, c, (tr + 4) * w)


def perceptual_sumsq(x, y, w1, b1, w2, b2, tr, vmem_limit):
    # x, y: (B, C, H, W); returns (B, n_chunks, 8, 128) partial sums of squared feat diff.
    b, c, h, w = x.shape
    n_chunks = h // tr
    band4 = (tr + 4) * w
    xw = _row_windows(x, tr)
    yw = _row_windows(y, tr)
    c1 = w1.shape[0]
    c2 = w2.shape[0]

    grid_spec = pltpu.PrefetchScalarGridSpec(
        num_scalar_prefetch=0,
        grid=(b, n_chunks),
        in_specs=[pl.BlockSpec((None, None, c, band4), lambda i, r: (i, r, 0, 0)),
                  pl.BlockSpec((None, None, c, band4), lambda i, r: (i, r, 0, 0)),
                  pl.BlockSpec((c1, 9 * c), lambda i, r: (0, 0)),
                  pl.BlockSpec((c1, 1), lambda i, r: (0, 0)),
                  pl.BlockSpec((c2, 9 * c1), lambda i, r: (0, 0)),
                  pl.BlockSpec((c2, 1), lambda i, r: (0, 0))],
        out_specs=pl.BlockSpec((None, None, 8, 128), lambda i, r: (i, r, 0, 0)),
    )

    flops = int(b * n_chunks * 2 * 2 * (c1 * 9 * c * (tr + 2) * w + c2 * 9 * c1 * tr * w))
    bytes_accessed = int(4 * (2 * b * n_chunks * c * band4
                              + c1 * 9 * c + c1 + c2 * 9 * c1 + c2
                              + b * n_chunks * 8 * 128))

    kern = functools.partial(_perc_kernel, height=h, width=w, tr=tr)
    return pl.pallas_call(
        kern,
        out_shape=jax.ShapeDtypeStruct((b, n_chunks, 8, 128), jnp.float32),
        grid_spec=grid_spec,
        compiler_params=pltpu.CompilerParams(
            dimension_semantics=("parallel", "parallel"), vmem_limit_bytes=vmem_limit),
        cost_estimate=pl.CostEstimate(
            flops=flops, transcendentals=0, bytes_accessed=bytes_accessed),
    )(xw, yw, w1, b1, w2, b2)


# --------------------------------- glue --------------------------------------
def gaussian_1d(window_size, sigma=1.5):
    x = jnp.arange(window_size, dtype=jnp.float32)
    g = jnp.exp(-((x - window_size // 2) ** 2) / (2.0 * sigma ** 2))
    return g / jnp.sum(g)


def band_matrix(n, g):
    # M[i, j] = g[j - i + half] inside the band, 0 outside (zero-padded 1-D conv,
    # matching pytorch_ssim's padded window).
    win = g.shape[0]
    half = win // 2
    idx = jnp.arange(n)
    diff = idx[None, :] - idx[:, None] + half
    valid = (diff >= 0) & (diff < win)
    diffc = jnp.clip(diff, 0, win - 1)
    return jnp.where(valid, g[diffc], 0.0).astype(jnp.float32)


def _vmem_capacity_bytes():
    try:
        info = pltpu.get_tpu_info()
        cap = getattr(info, "vmem_capacity_bytes", None)
        if cap:
            return int(cap)
    except Exception:
        pass
    return 128 << 20


def _vmem_limit_bytes():
    # Half of physical VMEM: 64 MiB on v5e/v6e (128 MiB), 32 MiB on v7x (64 MiB).
    return int(min(_vmem_capacity_bytes() // 2, 64 << 20))


def _planes_per_step(n, h, w, budget_bytes, max_planes=16):
    # Planes per SSIM grid step: fill toward the per-generation VMEM budget, keep the
    # restack unroll bounded, prefer >=2 grid steps (megacore), exact divisor of n.
    per_plane = 32 * h * w * 4
    p = max(1, min(n, max_planes, budget_bytes // max(per_plane, 1)))
    if n >= 2:
        p = min(p, max(1, n // 2))
    while n % p:
        p -= 1
    return p


def _row_tile(h, w, c, c1, c2, budget_bytes):
    # Rows per perceptual chunk: per-row live bytes ~ (taps + features) * W * 4,
    # prefer >=2 chunks (longer parallel grid), exact divisor of h.
    per_row = (11 * c + 12 * c1 + 4 * c2) * w * 4
    tr = max(1, min(h, budget_bytes // max(per_row, 1)))
    if h >= 2:
        tr = min(tr, max(1, h // 2))
    while h % tr:
        tr -= 1
    return tr


def inss_loss(output, target, params, alpha, beta, gamma):
    # output/target: (B, C, H, W) float32 (NCHW, PyTorch convention)
    b, c, h, w = output.shape
    x = output.astype(jnp.float32)
    y = target.astype(jnp.float32)
    vmem_limit = _vmem_limit_bytes()

    # ---- pixel (L1) + structural (1 - mean SSIM, window=11, gaussian sigma=1.5) ----
    n = b * c
    p = _planes_per_step(n, h, w, budget_bytes=vmem_limit // 2)
    gauss = gaussian_1d(11)
    gh = band_matrix(h, gauss)
    gw = band_matrix(w, gauss)
    l1_part, ssim_part = ssim_l1_sums(
        x.reshape(n, h, w), y.reshape(n, h, w), gw, gh, p, vmem_limit)
    n_pix = float(n * h * w)
    pixel_loss = jnp.sum(l1_part[:, 0, 0]) / n_pix
    structural_loss = 1.0 - jnp.sum(ssim_part[:, 0, 0]) / n_pix

    # ---- perceptual loss: deterministic 2-layer conv features + MSE (fused, row-tiled) --
    w1, b1, w2, b2 = params
    c1f = w1.shape[0]
    c2f = w2.shape[0]
    tr = _row_tile(h, w, c, c1f, c2f, budget_bytes=vmem_limit // 2)
    sq_part = perceptual_sumsq(x, y, w1, b1, w2, b2, tr, vmem_limit)
    perceptual_loss = jnp.sum(sq_part[:, :, 0, 0]) / float(b * c2f * h * w)

    return alpha * pixel_loss + beta * structural_loss + gamma * perceptual_loss


if __name__ == "__main__":
    key = jax.random.PRNGKey(0)
    k1, k2, k3, k4, k5, k6 = jax.random.split(key, 6)

    B, C, H, W = 2, 4, 16, 16
    C1, C2 = 8, 8
    alpha, beta, gamma = 1.0, 0.5, 0.1

    output = jax.random.uniform(k1, (B, C, H, W), jnp.float32)
    target = jax.random.uniform(k2, (B, C, H, W), jnp.float32)

    # deterministic synthetic perceptual-extractor weights
    w1 = 0.1 * jax.random.normal(k3, (C1, 9 * C), jnp.float32)
    b1 = 0.01 * jax.random.normal(k4, (C1, 1), jnp.float32)
    w2 = 0.1 * jax.random.normal(k5, (C2, 9 * C1), jnp.float32)
    b2 = 0.01 * jax.random.normal(k6, (C2, 1), jnp.float32)

    loss = inss_loss(output, target, (w1, b1, w2, b2), alpha, beta, gamma)
    loss = jax.block_until_ready(loss)
    assert bool(jnp.isfinite(loss)), "loss is not finite"
    print("KERNEL_OK")
</pallas_src>

<mosaic_0001>
module attributes {stable_mosaic.version = 11 : i64} {
  func.func @_ssim_l1_kernel(%arg0: i32, %arg1: memref<4x16x16xf32, #tpu.memory_space<vmem>>, %arg2: memref<4x16x16xf32, #tpu.memory_space<vmem>>, %arg3: memref<16x16xf32, #tpu.memory_space<vmem>>, %arg4: memref<16x16xf32, #tpu.memory_space<vmem>>, %arg5: memref<1x8x128xf32, #tpu.memory_space<vmem>>, %arg6: memref<1x8x128xf32, #tpu.memory_space<vmem>>) attributes {dimension_semantics = [#tpu.dimension_semantics<parallel>], iteration_bounds = array<i64: 2>, scalar_prefetch = 0 : i64, scratch_operands = 0 : i64, tpu.core_type = #tpu.core_type<tc>, window_params = [{transform_indices = @transform_0, window_bounds = array<i64: 4, 16, 16>}, {transform_indices = @transform_1, window_bounds = array<i64: 4, 16, 16>}, {pipeline_mode = #tpu.pipeline_mode<synchronous>, transform_indices = @transform_2, window_bounds = array<i64: 16, 16>}, {pipeline_mode = #tpu.pipeline_mode<synchronous>, transform_indices = @transform_3, window_bounds = array<i64: 16, 16>}, {transform_indices = @transform_4, window_bounds = array<i64: 1, 8, 128>}, {transform_indices = @transform_5, window_bounds = array<i64: 1, 8, 128>}]} {
    %c0 = arith.constant 0 : index
    %c0_0 = arith.constant 0 : index
    %c0_1 = arith.constant 0 : index
    %0 = vector.load %arg1[%c0, %c0_0, %c0_1] : memref<4x16x16xf32, #tpu.memory_space<vmem>>, vector<4x16x16xf32>
    %1 = vector.shape_cast %0 : vector<4x16x16xf32> to vector<64x16xf32>
    %c0_2 = arith.constant 0 : index
    %c0_3 = arith.constant 0 : index
    %c0_4 = arith.constant 0 : index
    %2 = vector.load %arg2[%c0_2, %c0_3, %c0_4] : memref<4x16x16xf32, #tpu.memory_space<vmem>>, vector<4x16x16xf32>
    %3 = vector.shape_cast %2 : vector<4x16x16xf32> to vector<64x16xf32>
    %4 = arith.mulf %1, %1 : vector<64x16xf32>
    %5 = arith.mulf %3, %3 : vector<64x16xf32>
    %6 = arith.mulf %1, %3 : vector<64x16xf32>
    %7 = tpu.concatenate %1, %3, %4, %5, %6 in 0 : vector<64x16xf32>, vector<64x16xf32>, vector<64x16xf32>, vector<64x16xf32>, vector<64x16xf32> -> vector<320x16xf32>
    %c0_5 = arith.constant 0 : index
    %c0_6 = arith.constant 0 : index
    %8 = vector.load %arg3[%c0_5, %c0_6] : memref<16x16xf32, #tpu.memory_space<vmem>>, vector<16x16xf32>
    %cst = arith.constant dense<0.000000e+00> : vector<320x16xf32>
    %9 = tpu.matmul %7, %8, %cst {dimension_numbers = #tpu.dot_dimension_numbers<[1], [0], [0], [1], [0, 0, 1, 1], [], []>} : vector<320x16xf32>, vector<16x16xf32>, vector<320x16xf32> -> vector<320x16xf32>
    %10 = vector.extract_strided_slice %9 {offsets = [0, 0], sizes = [16, 16], strides = [1, 1]} : vector<320x16xf32> to vector<16x16xf32>
    %11 = vector.extract_strided_slice %9 {offsets = [16, 0], sizes = [16, 16], strides = [1, 1]} : vector<320x16xf32> to vector<16x16xf32>
    %12 = vector.extract_strided_slice %9 {offsets = [32, 0], sizes = [16, 16], strides = [1, 1]} : vector<320x16xf32> to vector<16x16xf32>
    %13 = vector.extract_strided_slice %9 {offsets = [48, 0], sizes = [16, 16], strides = [1, 1]} : vector<320x16xf32> to vector<16x16xf32>
    %14 = vector.extract_strided_slice %9 {offsets = [64, 0], sizes = [16, 16], strides = [1, 1]} : vector<320x16xf32> to vector<16x16xf32>
    %15 = vector.extract_strided_slice %9 {offsets = [80, 0], sizes = [16, 16], strides = [1, 1]} : vector<320x16xf32> to vector<16x16xf32>
    %16 = vector.extract_strided_slice %9 {offsets = [96, 0], sizes = [16, 16], strides = [1, 1]} : vector<320x16xf32> to vector<16x16xf32>
    %17 = vector.extract_strided_slice %9 {offsets = [112, 0], sizes = [16, 16], strides = [1, 1]} : vector<320x16xf32> to vector<16x16xf32>
    %18 = vector.extract_strided_slice %9 {offsets = [128, 0], sizes = [16, 16], strides = [1, 1]} : vector<320x16xf32> to vector<16x16xf32>
    %19 = vector.extract_strided_slice %9 {offsets = [144, 0], sizes = [16, 16], strides = [1, 1]} : vector<320x16xf32> to vector<16x16xf32>
    %20 = vector.extract_strided_slice %9 {offsets = [160, 0], sizes = [16, 16], strides = [1, 1]} : vector<320x16xf32> to vector<16x16xf32>
    %21 = vector.extract_strided_slice %9 {offsets = [176, 0], sizes = [16, 16], strides = [1, 1]} : vector<320x16xf32> to vector<16x16xf32>
    %22 = vector.extract_strided_slice %9 {offsets = [192, 0], sizes = [16, 16], strides = [1, 1]} : vector<320x16xf32> to vector<16x16xf32>
    %23 = vector.extract_strided_slice %9 {offsets = [208, 0], sizes = [16, 16], strides = [1, 1]} : vector<320x16xf32> to vector<16x16xf32>
    %24 = vector.extract_strided_slice %9 {offsets = [224, 0], sizes = [16, 16], strides = [1, 1]} : vector<320x16xf32> to vector<16x16xf32>
    %25 = vector.extract_strided_slice %9 {offsets = [240, 0], sizes = [16, 16], strides = [1, 1]} : vector<320x16xf32> to vector<16x16xf32>
    %26 = vector.extract_strided_slice %9 {offsets = [256, 0], sizes = [16, 16], strides = [1, 1]} : vector<320x16xf32> to vector<16x16xf32>
    %27 = vector.extract_strided_slice %9 {offsets = [272, 0], sizes = [16, 16], strides = [1, 1]} : vector<320x16xf32> to vector<16x16xf32>
    %28 = vector.extract_strided_slice %9 {offsets = [288, 0], sizes = [16, 16], strides = [1, 1]} : vector<320x16xf32> to vector<16x16xf32>
    %29 = vector.extract_strided_slice %9 {offsets = [304, 0], sizes = [16, 16], strides = [1, 1]} : vector<320x16xf32> to vector<16x16xf32>
    %30 = tpu.concatenate %10, %11, %12, %13, %14, %15, %16, %17, %18, %19, %20, %21, %22, %23, %24, %25 in 1 : vector<16x16xf32>, vector<16x16xf32>, vector<16x16xf32>, vector<16x16xf32>, vector<16x16xf32>, vector<16x16xf32>, vector<16x16xf32>, vector<16x16xf32>, vector<16x16xf32>, vector<16x16xf32>, vector<16x16xf32>, vector<16x16xf32>, vector<16x16xf32>, vector<16x16xf32>, vector<16x16xf32>, vector<16x16xf32> -> vector<16x256xf32>
    %31 = tpu.concatenate %26, %27, %28, %29 in 1 : vector<16x16xf32>, vector<16x16xf32>, vector<16x16xf32>, vector<16x16xf32> -> vector<16x64xf32>
    %32 = tpu.concatenate %30, %31 in 1 : vector<16x256xf32>, vector<16x64xf32> -> vector<16x320xf32>
    %c0_7 = arith.constant 0 : index
    %c0_8 = arith.constant 0 : index
    %33 = vector.load %arg4[%c0_7, %c0_8] : memref<16x16xf32, #tpu.memory_space<vmem>>, vector<16x16xf32>
    %cst_9 = arith.constant dense<0.000000e+00> : vector<16x320xf32>
    %34 = tpu.matmul %33, %32, %cst_9 {dimension_numbers = #tpu.dot_dimension_numbers<[1], [0], [0], [1], [0, 0, 1, 1], [], []>} : vector<16x16xf32>, vector<16x320xf32>, vector<16x320xf32> -> vector<16x320xf32>
    %35 = vector.extract_strided_slice %34 {offsets = [0, 0], sizes = [16, 64], strides = [1, 1]} : vector<16x320xf32> to vector<16x64xf32>
    %36 = vector.extract_strided_slice %34 {offsets = [0, 64], sizes = [16, 64], strides = [1, 1]} : vector<16x320xf32> to vector<16x64xf32>
    %37 = vector.extract_strided_slice %34 {offsets = [0, 128], sizes = [16, 64], strides = [1, 1]} : vector<16x320xf32> to vector<16x64xf32>
    %38 = vector.extract_strided_slice %34 {offsets = [0, 192], sizes = [16, 64], strides = [1, 1]} : vector<16x320xf32> to vector<16x64xf32>
    %39 = vector.extract_strided_slice %34 {offsets = [0, 256], sizes = [16, 64], strides = [1, 1]} : vector<16x320xf32> to vector<16x64xf32>
    %40 = arith.mulf %35, %35 : vector<16x64xf32>
    %41 = arith.mulf %36, %36 : vector<16x64xf32>
    %42 = arith.mulf %35, %36 : vector<16x64xf32>
    %43 = arith.subf %37, %40 : vector<16x64xf32>
    %44 = arith.subf %38, %41 : vector<16x64xf32>
    %45 = arith.subf %39, %42 : vector<16x64xf32>
    %cst_10 = arith.constant 2.000000e+00 : f32
    %46 = vector.broadcast %cst_10 : f32 to vector<16x64xf32>
    %47 = arith.mulf %46, %42 : vector<16x64xf32>
    %cst_11 = arith.constant 9.99999974E-5 : f32
    %48 = vector.broadcast %cst_11 : f32 to vector<16x64xf32>
    %49 = arith.addf %47, %48 : vector<16x64xf32>
    %cst_12 = arith.constant 2.000000e+00 : f32
    %50 = vector.broadcast %cst_12 : f32 to vector<16x64xf32>
    %51 = arith.mulf %50, %45 : vector<16x64xf32>
    %cst_13 = arith.constant 8.99999984E-4 : f32
    %52 = vector.broadcast %cst_13 : f32 to vector<16x64xf32>
    %53 = arith.addf %51, %52 : vector<16x64xf32>
    %54 = arith.mulf %49, %53 : vector<16x64xf32>
    %55 = arith.addf %40, %41 : vector<16x64xf32>
    %cst_14 = arith.constant 9.99999974E-5 : f32
    %56 = vector.broadcast %cst_14 : f32 to vector<16x64xf32>
    %57 = arith.addf %55, %56 : vector<16x64xf32>
    %58 = arith.addf %43, %44 : vector<16x64xf32>
    %cst_15 = arith.constant 8.99999984E-4 : f32
    %59 = vector.broadcast %cst_15 : f32 to vector<16x64xf32>
    %60 = arith.addf %58, %59 : vector<16x64xf32>
    %61 = arith.mulf %57, %60 : vector<16x64xf32>
    %62 = tpu.reciprocal %61 {approx = true} : vector<16x64xf32> -> vector<16x64xf32>
    %63 = arith.mulf %54, %62 : vector<16x64xf32>
    %cst_16 = arith.constant 0.000000e+00 : f32
    %64 = vector.broadcast %cst_16 : f32 to vector<1x8x128xf32>
    %65 = arith.subf %1, %3 : vector<64x16xf32>
    %66 = math.absf %65 : vector<64x16xf32>
    %67 = vector.shape_cast %66 : vector<64x16xf32> to vector<1x64x16xf32>
    %cst_17 = arith.constant dense<0.000000e+00> : vector<1xf32>
    %68 = vector.multi_reduction <add>, %67, %cst_17 [1, 2] : vector<1x64x16xf32> to vector<1xf32>
    %69 = vector.shape_cast %68 : vector<1xf32> to vector<1x1x1xf32>
    %70 = vector.extract %69[0, 0, 0] : f32 from vector<1x1x1xf32>
    %71 = vector.broadcast %70 : f32 to vector<1x8x128xf32>
    %72 = arith.addf %64, %71 : vector<1x8x128xf32>
    %c0_18 = arith.constant 0 : index
    %c0_19 = arith.constant 0 : index
    %c0_20 = arith.constant 0 : index
    %73 = vector.load %arg5[%c0_18, %c0_19, %c0_20] : memref<1x8x128xf32, #tpu.memory_space<vmem>>, vector<1x8x128xf32>
    tpu.vector_store %arg5[%c0_18, %c0_19, %c0_20], %72 {strides = array<i32>} : memref<1x8x128xf32, #tpu.memory_space<vmem>>, vector<1x8x128xf32>,
    %cst_21 = arith.constant 0.000000e+00 : f32
    %74 = vector.broadcast %cst_21 : f32 to vector<1x8x128xf32>
    %75 = vector.shape_cast %63 : vector<16x64xf32> to vector<1x16x64xf32>
    %cst_22 = arith.constant dense<0.000000e+00> : vector<1xf32>
    %76 = vector.multi_reduction <add>, %75, %cst_22 [1, 2] : vector<1x16x64xf32> to vector<1xf32>
    %77 = vector.shape_cast %76 : vector<1xf32> to vector<1x1x1xf32>
    %78 = vector.extract %77[0, 0, 0] : f32 from vector<1x1x1xf32>
    %79 = vector.broadcast %78 : f32 to vector<1x8x128xf32>
    %80 = arith.addf %74, %79 : vector<1x8x128xf32>
    %c0_23 = arith.constant 0 : index
    %c0_24 = arith.constant 0 : index
    %c0_25 = arith.constant 0 : index
    %81 = vector.load %arg6[%c0_23, %c0_24, %c0_25] : memref<1x8x128xf32, #tpu.memory_space<vmem>>, vector<1x8x128xf32>
    tpu.vector_store %arg6[%c0_23, %c0_24, %c0_25], %80 {strides = array<i32>} : memref<1x8x128xf32, #tpu.memory_space<vmem>>, vector<1x8x128xf32>,
    return
  }
  func.func @transform_0(%arg0: i32) -> (i32, i32, i32) {
    %c0_i32 = arith.constant 0 : i32
    %c0_i32_0 = arith.constant 0 : i32
    %c0_i32_1 = arith.constant 0 : i32
    return %arg0, %c0_i32, %c0_i32_0 : i32, i32, i32
  }
  func.func @transform_1(%arg0: i32) -> (i32, i32, i32) {
    %c0_i32 = arith.constant 0 : i32
    %c0_i32_0 = arith.constant 0 : i32
    %c0_i32_1 = arith.constant 0 : i32
    return %arg0, %c0_i32, %c0_i32_0 : i32, i32, i32
  }
  func.func @transform_2(%arg0: i32) -> (i32, i32) {
    %c0_i32 = arith.constant 0 : i32
    %c0_i32_0 = arith.constant 0 : i32
    %c0_i32_1 = arith.constant 0 : i32
    return %c0_i32, %c0_i32_0 : i32, i32
  }
  func.func @transform_3(%arg0: i32) -> (i32, i32) {
    %c0_i32 = arith.constant 0 : i32
    %c0_i32_0 = arith.constant 0 : i32
    %c0_i32_1 = arith.constant 0 : i32
    return %c0_i32, %c0_i32_0 : i32, i32
  }
  func.func @transform_4(%arg0: i32) -> (i32, i32, i32) {
    %c0_i32 = arith.constant 0 : i32
    %c0_i32_0 = arith.constant 0 : i32
    %c0_i32_1 = arith.constant 0 : i32
    return %arg0, %c0_i32, %c0_i32_0 : i32, i32, i32
  }
  func.func @transform_5(%arg0: i32) -> (i32, i32, i32) {
    %c0_i32 = arith.constant 0 : i32
    %c0_i32_0 = arith.constant 0 : i32
    %c0_i32_1 = arith.constant 0 : i32
    return %arg0, %c0_i32, %c0_i32_0 : i32, i32, i32
  }
}

</mosaic_0001>

<llo_original>
// kernel: tpu_custom_call.1
$region0: #{tpu_custom_call.1}
  #allocation0 [shape = 'u32[]', space=smem, size = 0x4, offset = 0x4, fixed_abs, tag = 'smem constant byte address 0x4 - core index']
  #allocation1 [shape = 'u32[144,128]{1,0:T(1,128)}', space=vmem, size = 0x12000, scoped, tag = 'internal scratch']
  %s0 = inlined_call_operand.hbm [shape: f32[8,16,16], index: 0, kind: input, shape index: {}]
  %s1 = inlined_call_operand.hbm [shape: f32[8,16,16], index: 1, kind: input, shape index: {}]
  %s2 = inlined_call_operand.hbm [shape: f32[16,16], index: 2, kind: input, shape index: {}]
  %s3 = inlined_call_operand.hbm [shape: f32[16,16], index: 3, kind: input, shape index: {}]
  %s4 = inlined_call_operand.hbm [shape: f32[2,8,128], index: 4, kind: output, shape index: {0}]
  %s5 = inlined_call_operand.hbm [shape: f32[2,8,128], index: 5, kind: output, shape index: {1}]
  %6 = xla_tuple %s4, %s5
  %s7 = sld [smem:[#allocation0]]
  $region73: #{tpu_custom_call.1} parent=0
    _
  %s9 = ssub.s32 1, %s7
  %s10 = scalar_select 0, %s9, %s7
  $region1: #{tpu_custom_call.1} parent=0
    #allocation2 [shape = 'u8[65536]{0}', space=vmem, size = 0x10000, scoped, tag = 'input window, operand 0']
    #allocation3 [shape = 's32[2]{0}', space=sflag, size = 0x8, scoped, tag = 'scoped memory for tpu_custom_call.1']
    #allocation4 [shape = 's32[2]{0}', space=sflag, size = 0x8, scoped, tag = 'scoped memory for tpu_custom_call.1']
    #allocation5 [shape = 'u8[65536]{0}', space=vmem, size = 0x10000, scoped, tag = 'input window, operand 1']
    #allocation6 [shape = 's32[2]{0}', space=sflag, size = 0x8, scoped, tag = 'scoped memory for tpu_custom_call.1']
    #allocation7 [shape = 'u8[8192]{0}', space=vmem, size = 0x2000, scoped, tag = 'input window, operand 2, single buffered']
    #allocation8 [shape = 'u8[8192]{0}', space=vmem, size = 0x2000, scoped, tag = 'input window, operand 3, single buffered']
    #allocation9 [shape = 's32[1]{0}', space=sflag, size = 0x4, scoped, tag = 'scoped memory for tpu_custom_call.1']
    #allocation10 [shape = 'u8[8192]{0}', space=vmem, size = 0x2000, scoped, tag = 'output window, operand 0']
    #allocation11 [shape = 'u8[8192]{0}', space=vmem, size = 0x2000, scoped, tag = 'output window, operand 1']
    #allocation12 [shape = 's32[2]{0}', space=sflag, size = 0x8, scoped, tag = 'scoped memory for tpu_custom_call.1']
    %11 = vsyncpa [#allocation3], 0
    %s12 = scalar_lea.sflag [#allocation3], 1
    %13 = vsyncpa %s12, 0
    %14 = vsyncpa [#allocation6], 0
    %s15 = scalar_lea.sflag [#allocation6], 1
    %16 = vsyncpa %s15, 0
    %17 = vsyncpa [#allocation9], 0
    %18 = vsyncpa [#allocation4], 0
    %s19 = scalar_lea.sflag [#allocation4], 1
    %20 = vsyncpa %s19, 0
    %21 = vsyncpa [#allocation12], 0
    %s22 = scalar_lea.sflag [#allocation12], 1
    %23 = vsyncpa %s22, 0
    loop: start=0, step=1, limit=4
    $region2: #{tpu_custom_call.1} parent=1 // loop_pre_header
      _
    $region3: #{tpu_custom_call.1} parent=1 // loop_header
      %s25 = sphi 0, %s29
      %p26 = scmp.ge.s32.totalorder %s25, 4
      %s35 = sphi 0, %s37
      %s38 = sphi 0, %s35
      %s39 = sphi 0, %s38
      %s55 = sphi 0, %s39
      %s61 = sphi 0, %s63
      %s64 = sphi 0, %s61
      %s65 = sphi 0, %s64
      %s81 = sphi 0, %s65
      %s85 = sphi 0, %s85
      %s87 = sphi 0, %s85
      %s88 = sphi 0, %s87
      %s102 = sphi 0, %s88
      %s106 = sphi 0, %s106
      %s108 = sphi 0, %s106
      %s109 = sphi 0, %s108
      %s123 = sphi 0, %s109
      %s129 = sphi 0, %s131
      %s132 = sphi 0, %s129
      %s133 = sphi 0, %s132
      %s149 = sphi 0, %s133
      %s155 = sphi 0, %s157
      %s158 = sphi 0, %s155
      %s159 = sphi 0, %s158
      %s175 = sphi 0, %s159
    $region4: #{tpu_custom_call.1} parent=1 // loop_header_branch
      %28 = sbr.rel (%p26) target = $region8
    $region5: #{tpu_custom_call.1} parent=1 // loop_body
      %s30 = ssub.s32 %s25, 1
      %s31 = ssub.s32 %s25, 2
      %s32 = sadd.s32 %s25, 1
      %s33 = ssub.s32 %s25, %s32
      %p34 = scmp.eq.s32.totalorder %s33, 0
      %s36 = sadd.s32 %s35, 1
      %s37 = scalar_select %p34, %s35, %s36
      %p40 = pneg %p34
      %p41 = scmp.eq.s32.totalorder %s25, 1
      %p42 = por %p40, %p41
      %p43 = scmp.ne.s32.totalorder %s35, %s38
      %p44 = scmp.eq.s32.totalorder %s25, 0
      %p45 = por %p43, %p44
      %p46 = scmp.ne.s32.totalorder %s35, %s38
      %p47 = scmp.eq.s32.totalorder %s30, 1
      %p48 = por %p46, %p47
      %p49 = scmp.ne.s32.totalorder %s38, %s39
      %p50 = scmp.eq.s32.totalorder %s30, 0
      %p51 = por %p49, %p50
      %p52 = scmp.ne.s32.totalorder %s38, %s39
      %p53 = scmp.eq.s32.totalorder %s31, 1
      %p54 = por %p52, %p53
      %p56 = scmp.ne.s32.totalorder %s39, %s55
      %p57 = scmp.eq.s32.totalorder %s31, 0
      %p58 = por %p56, %p57
      %s59 = ssub.s32 %s25, %s32
      %p60 = scmp.eq.s32.totalorder %s59, 0
      %s62 = sadd.s32 %s61, 1
      %s63 = scalar_select %p60, %s61, %s62
      %p66 = pneg %p60
      %p67 = scmp.eq.s32.totalorder %s25, 1
      %p68 = por %p66, %p67
      %p69 = scmp.ne.s32.totalorder %s61, %s64
      %p70 = scmp.eq.s32.totalorder %s25, 0
      %p71 = por %p69, %p70
      %p72 = scmp.ne.s32.totalorder %s61, %s64
      %p73 = scmp.eq.s32.totalorder %s30, 1
      %p74 = por %p72, %p73
      %p75 = scmp.ne.s32.totalorder %s64, %s65
      %p76 = scmp.eq.s32.totalorder %s30, 0
      %p77 = por %p75, %p76
      %p78 = scmp.ne.s32.totalorder %s64, %s65
      %p79 = scmp.eq.s32.totalorder %s31, 1
      %p80 = por %p78, %p79
      %p82 = scmp.ne.s32.totalorder %s65, %s81
      %p83 = scmp.eq.s32.totalorder %s31, 0
      %p84 = por %p82, %p83
      %s86 = sadd.s32 %s85, 1
      %p89 = scmp.eq.s32.totalorder %s25, 1
      %p90 = scmp.ne.s32.totalorder %s85, %s87
      %p91 = scmp.eq.s32.totalorder %s25, 0
      %p92 = por %p90, %p91
      %p93 = scmp.ne.s32.totalorder %s85, %s87
      %p94 = scmp.eq.s32.totalorder %s30, 1
      %p95 = por %p93, %p94
      %p96 = scmp.ne.s32.totalorder %s87, %s88
      %p97 = scmp.eq.s32.totalorder %s30, 0
      %p98 = por %p96, %p97
      %p99 = scmp.ne.s32.totalorder %s87, %s88
      %p100 = scmp.eq.s32.totalorder %s31, 1
      %p101 = por %p99, %p100
      %p103 = scmp.ne.s32.totalorder %s88, %s102
      %p104 = scmp.eq.s32.totalorder %s31, 0
      %p105 = por %p103, %p104
      %s107 = sadd.s32 %s106, 1
      %p110 = scmp.eq.s32.totalorder %s25, 1
      %p111 = scmp.ne.s32.totalorder %s106, %s108
      %p112 = scmp.eq.s32.totalorder %s25, 0
      %p113 = por %p111, %p112
      %p114 = scmp.ne.s32.totalorder %s106, %s108
      %p115 = scmp.eq.s32.totalorder %s30, 1
      %p116 = por %p114, %p115
      %p117 = scmp.ne.s32.totalorder %s108, %s109
      %p118 = scmp.eq.s32.totalorder %s30, 0
      %p119 = por %p117, %p118
      %p120 = scmp.ne.s32.totalorder %s108, %s109
      %p121 = scmp.eq.s32.totalorder %s31, 1
      %p122 = por %p120, %p121
      %p124 = scmp.ne.s32.totalorder %s109, %s123
      %p125 = scmp.eq.s32.totalorder %s31, 0
      %p126 = por %p124, %p125
      %s127 = ssub.s32 %s25, %s32
      %p128 = scmp.eq.s32.totalorder %s127, 0
      %s130 = sadd.s32 %s129, 1
      %s131 = scalar_select %p128, %s129, %s130
      %p134 = pneg %p128
      %p135 = scmp.eq.s32.totalorder %s25, 1
      %p136 = por %p134, %p135
      %p137 = scmp.ne.s32.totalorder %s129, %s132
      %p138 = scmp.eq.s32.totalorder %s25, 0
      %p139 = por %p137, %p138
      %p140 = scmp.ne.s32.totalorder %s129, %s132
      %p141 = scmp.eq.s32.totalorder %s30, 1
      %p142 = por %p140, %p141
      %p143 = scmp.ne.s32.totalorder %s132, %s133
      %p144 = scmp.eq.s32.totalorder %s30, 0
      %p145 = por %p143, %p144
      %p146 = scmp.ne.s32.totalorder %s132, %s133
      %p147 = scmp.eq.s32.totalorder %s31, 1
      %p148 = por %p146, %p147
      %p150 = scmp.ne.s32.totalorder %s133, %s149
      %p151 = scmp.eq.s32.totalorder %s31, 0
      %p152 = por %p150, %p151
      %s153 = ssub.s32 %s25, %s32
      %p154 = scmp.eq.s32.totalorder %s153, 0
      %s156 = sadd.s32 %s155, 1
      %s157 = scalar_select %p154, %s155, %s156
      %p160 = pneg %p154
      %p161 = scmp.eq.s32.totalorder %s25, 1
      %p162 = por %p160, %p161
      %p163 = scmp.ne.s32.totalorder %s155, %s158
      %p164 = scmp.eq.s32.totalorder %s25, 0
      %p165 = por %p163, %p164
      %p166 = scmp.ne.s32.totalorder %s155, %s158
      %p167 = scmp.eq.s32.totalorder %s30, 1
      %p168 = por %p166, %p167
      %p169 = scmp.ne.s32.totalorder %s158, %s159
      %p170 = scmp.eq.s32.totalorder %s30, 0
      %p171 = por %p169, %p170
      %p172 = scmp.ne.s32.totalorder %s158, %s159
      %p173 = scmp.eq.s32.totalorder %s31, 1
      %p174 = por %p172, %p173
      %p176 = scmp.ne.s32.totalorder %s159, %s175
      %p177 = scmp.eq.s32.totalorder %s31, 0
      %p178 = por %p176, %p177
      %p179 = scmp.le.s32.totalorder 1, %s25
      %p180 = scmp.lt.s32.totalorder %s25, 3
      %p181 = pnand %p179, %p180
      %p182 = pneg %p181
      // Predicated region
      $region9: #{tpu_custom_call.1} parent=5 // pred_check
        _
      $region10: #{tpu_custom_call.1} parent=5 // pred_check_branch
        %184 = sbr.rel (%p181) target = $region12
      $region11: #{tpu_custom_call.1} parent=5 // pred_region
        %s185 = ssub.s32 %s25, 1
        // Predicated region
        $region13: #{tpu_custom_call.1} parent=11 // pred_check
          %p186 = pneg %p98
        $region14: #{tpu_custom_call.1} parent=11 // pred_check_branch
          %188 = sbr.rel (%p186) target = $region16
        $region15: #{tpu_custom_call.1} parent=11 // pred_region
          %s190 = ssub.s32 256, 256
          %191 = vsyncadd [#allocation6], %s190
          %s192 = sshll.u32 [#allocation7], 4
          %s193 = int_to_ptr.vmem [resolvable:$true] %s192
          %198 = dma.hbm_to_vmem [thread:$0]  %s2, 256, %s193, [#allocation6], 128, 128, 8
        $region16: #{tpu_custom_call.1} parent=11 // pred_fallthru
          _
        // Predicated region
        $region17: #{tpu_custom_call.1} parent=11 // pred_check
          %p199 = pneg %p119
        $region18: #{tpu_custom_call.1} parent=11 // pred_check_branch
          %201 = sbr.rel (%p199) target = $region20
        $region19: #{tpu_custom_call.1} parent=11 // pred_region
          %s203 = ssub.s32 256, 256
          %204 = vsyncadd [#allocation9], %s203
          %s205 = sshll.u32 [#allocation8], 4
          %s206 = int_to_ptr.vmem [resolvable:$true] %s205
          %211 = dma.hbm_to_vmem [thread:$0]  %s3, 256, %s206, [#allocation9], 128, 128, 8
        $region20: #{tpu_custom_call.1} parent=11 // pred_fallthru
          _
      $region12: #{tpu_custom_call.1} parent=5 // pred_fallthru
        _
      %p212 = scmp.lt.s32.totalorder %s25, 2
      // Predicated region
      $region21: #{tpu_custom_call.1} parent=5 // pred_check
        %p213 = pneg %p212
      $region22: #{tpu_custom_call.1} parent=5 // pred_check_branch
        %215 = sbr.rel (%p213) target = $region24
      $region23: #{tpu_custom_call.1} parent=5 // pred_region
        // Predicated region
        $region25: #{tpu_custom_call.1} parent=23 // pred_check
          %p216 = pneg %p45
        $region26: #{tpu_custom_call.1} parent=23 // pred_check_branch
          %218 = sbr.rel (%p216) target = $region28
        $region27: #{tpu_custom_call.1} parent=23 // pred_region
          %s219 = sand.u32 %s35, 1
          %s220 = scalar_lea.sflag [#allocation3], %s219
          %s221 = sand.u32 %s35, 1
          %s222 = smul.addr %s221, 64
          %s223 = scalar_lea.vmem [#allocation2], %s222
          %s224 = smul.u32 4, %s25
          %s226 = ssub.s32 1024, 1024
          %227 = vsyncadd %s220, %s226
          %s228 = smul.addr %s224, 2
          %s229 = smul.addr %s228, 128
          %s230 = scalar_lea.hbm %s0, %s229
          %s231 = sshll.u32 %s223, 4
          %s232 = int_to_ptr.vmem [resolvable:$true] %s231
          %237 = dma.hbm_to_vmem [thread:$0]  %s230, 1024, %s232, %s220, 128, 128, 8
        $region28: #{tpu_custom_call.1} parent=23 // pred_fallthru
          _
        // Predicated region
        $region29: #{tpu_custom_call.1} parent=23 // pred_check
          %p238 = pneg %p71
        $region30: #{tpu_custom_call.1} parent=23 // pred_check_branch
          %240 = sbr.rel (%p238) target = $region32
        $region31: #{tpu_custom_call.1} parent=23 // pred_region
          %s241 = sand.u32 %s25, 1
          %s242 = scalar_lea.sflag [#allocation6], %s241
          %s243 = sand.u32 %s61, 1
          %s244 = smul.addr %s243, 64
          %s245 = scalar_lea.vmem [#allocation5], %s244
          %s246 = smul.u32 4, %s25
          %s248 = ssub.s32 1024, 1024
          %249 = vsyncadd %s242, %s248
          %s250 = smul.addr %s246, 2
          %s251 = smul.addr %s250, 128
          %s252 = scalar_lea.hbm %s1, %s251
          %s253 = sshll.u32 %s245, 4
          %s254 = int_to_ptr.vmem [resolvable:$true] %s253
          %259 = dma.hbm_to_vmem [thread:$0]  %s252, 1024, %s254, %s242, 128, 128, 8
        $region32: #{tpu_custom_call.1} parent=23 // pred_fallthru
          _
      $region24: #{tpu_custom_call.1} parent=5 // pred_fallthru
        _
      %p260 = scmp.le.s32.totalorder 1, %s25
      %p261 = scmp.lt.s32.totalorder %s25, 3
      %p262 = pnand %p260, %p261
      %p263 = pneg %p262
      // Predicated region
      $region33: #{tpu_custom_call.1} parent=5 // pred_check
        _
      $region34: #{tpu_custom_call.1} parent=5 // pred_check_branch
        %265 = sbr.rel (%p262) target = $region36
      $region35: #{tpu_custom_call.1} parent=5 // pred_region
        %s266 = ssub.s32 %s25, 1
        %s267 = sand.u32 %s38, 1
        %s268 = scalar_lea.sflag [#allocation3], %s267
        %s269 = sand.u32 %s38, 1
        %s270 = smul.addr %s269, 64
        %s271 = scalar_lea.vmem [#allocation2], %s270
        // Predicated region
        $region37: #{tpu_custom_call.1} parent=35 // pred_check
          %p272 = pneg %p51
        $region38: #{tpu_custom_call.1} parent=35 // pred_check_branch
          %274 = sbr.rel (%p272) target = $region40
        $region39: #{tpu_custom_call.1} parent=35 // pred_region
          %275 = dma.done %s268, 1024
        $region40: #{tpu_custom_call.1} parent=35 // pred_fallthru
          _
        %s276 = sand.u32 %s30, 1
        %s277 = scalar_lea.sflag [#allocation6], %s276
        %s278 = sand.u32 %s64, 1
        %s279 = smul.addr %s278, 64
        %s280 = scalar_lea.vmem [#allocation5], %s279
        // Predicated region
        $region41: #{tpu_custom_call.1} parent=35 // pred_check
          %p281 = pneg %p77
        $region42: #{tpu_custom_call.1} parent=35 // pred_check_branch
          %283 = sbr.rel (%p281) target = $region44
        $region43: #{tpu_custom_call.1} parent=35 // pred_region
          %284 = dma.done %s277, 1024
        $region44: #{tpu_custom_call.1} parent=35 // pred_fallthru
          _
        // Predicated region
        $region45: #{tpu_custom_call.1} parent=35 // pred_check
          %p285 = pneg %p98
        $region46: #{tpu_custom_call.1} parent=35 // pred_check_branch
          %287 = sbr.rel (%p285) target = $region48
        $region47: #{tpu_custom_call.1} parent=35 // pred_region
          %288 = dma.done [#allocation6], 256
        $region48: #{tpu_custom_call.1} parent=35 // pred_fallthru
          _
        // Predicated region
        $region49: #{tpu_custom_call.1} parent=35 // pred_check
          %p289 = pneg %p119
        $region50: #{tpu_custom_call.1} parent=35 // pred_check_branch
          %291 = sbr.rel (%p289) target = $region52
        $region51: #{tpu_custom_call.1} parent=35 // pred_region
          %292 = dma.done [#allocation9], 256
        $region52: #{tpu_custom_call.1} parent=35 // pred_fallthru
          _
        %s293 = sand.u32 %s38, 1
        %s294 = scalar_lea.sflag [#allocation3], %s293
        %s295 = sand.u32 %s38, 1
        %s296 = smul.addr %s295, 64
        %s297 = scalar_lea.vmem [#allocation2], %s296
        %p298 = pneg %p51
        %p299 = pneg %p48
        %s300 = sand.u32 %s30, 1
        %s301 = scalar_lea.sflag [#allocation6], %s300
        %s302 = sand.u32 %s64, 1
        %s303 = smul.addr %s302, 64
        %s304 = scalar_lea.vmem [#allocation5], %s303
        %p305 = pneg %p77
        %p306 = pneg %p74
        %p307 = pneg %p98
        %p308 = pneg %p95
        %p309 = pneg %p119
        %p310 = pneg %p116
        %p311 = pneg %p145
        %p312 = pneg %p142
        %s313 = sand.u32 %s132, 1
        %s314 = scalar_lea.sflag [#allocation4], %s313
        %s315 = sand.u32 %s132, 1
        %s316 = smul.addr %s315, 8
        %s317 = scalar_lea.vmem [#allocation10], %s316
        %p318 = pneg %p171
        %p319 = pneg %p168
        %s320 = sand.u32 %s158, 1
        %s321 = scalar_lea.sflag [#allocation12], %s320
        %s322 = sand.u32 %s158, 1
        %s323 = smul.addr %s322, 8
        %s324 = scalar_lea.vmem [#allocation11], %s323
        %s325 = smul.u32 4, %s30
        %s326 = smul.u32 4, %s30
        %v327 = vld [vmem:[%s271] sm:$0xff]
        %v328 = vld [vmem:[%s271 + $0x8] sm:$0xff]
        %v329 = vld [vmem:[%s271 + $0x10] sm:$0xff]
        %v330 = vld [vmem:[%s271 + $0x18] sm:$0xff]
        %v331 = vld [vmem:[%s271 + $0x20] sm:$0xff]
        %v332 = vld [vmem:[%s271 + $0x28] sm:$0xff]
        %v333 = vld [vmem:[%s271 + $0x30] sm:$0xff]
        %v334 = vld [vmem:[%s271 + $0x38] sm:$0xff]
        %v335 = vld [vmem:[%s280] sm:$0xff]
        %v336 = vld [vmem:[%s280 + $0x8] sm:$0xff]
        %v337 = vld [vmem:[%s280 + $0x10] sm:$0xff]
        %v338 = vld [vmem:[%s280 + $0x18] sm:$0xff]
        %v339 = vld [vmem:[%s280 + $0x20] sm:$0xff]
        %v340 = vld [vmem:[%s280 + $0x28] sm:$0xff]
        %v341 = vld [vmem:[%s280 + $0x30] sm:$0xff]
        %v342 = vld [vmem:[%s280 + $0x38] sm:$0xff]
        %v343 = vmul.f32 %v327, %v327
        %v344 = vmul.f32 %v328, %v328
        %v345 = vmul.f32 %v329, %v329
        %v346 = vmul.f32 %v330, %v330
        %v347 = vmul.f32 %v331, %v331
        %v348 = vmul.f32 %v332, %v332
        %v349 = vmul.f32 %v333, %v333
        %v350 = vmul.f32 %v334, %v334
        %v351 = vmul.f32 %v335, %v335
        %v352 = vmul.f32 %v336, %v336
        %v353 = vmul.f32 %v337, %v337
        %v354 = vmul.f32 %v338, %v338
        %v355 = vmul.f32 %v339, %v339
        %v356 = vmul.f32 %v340, %v340
        %v357 = vmul.f32 %v341, %v341
        %v358 = vmul.f32 %v342, %v342
        %v359 = vmul.f32 %v327, %v335
        %v360 = vmul.f32 %v328, %v336
        %v361 = vmul.f32 %v329, %v337
        %v362 = vmul.f32 %v330, %v338
        %v363 = vmul.f32 %v331, %v339
        %v364 = vmul.f32 %v332, %v340
        %v365 = vmul.f32 %v333, %v341
        %v366 = vmul.f32 %v334, %v342
        %v367 = vld [vmem:[#allocation7] sm:$0xff]
        %v368 = vld [vmem:[#allocation7 + $0x8] sm:$0xff]
        %vm369 = vcmask 130048
        %v371 = vsel %vm369, %v327, 0
        %v374 = vsel %vm369, %v328, 0
        %v377 = vsel %vm369, %v329, 0
        %v380 = vsel %vm369, %v330, 0
        %v383 = vsel %vm369, %v331, 0
        %v386 = vsel %vm369, %v332, 0
        %v389 = vsel %vm369, %v333, 0
        %v392 = vsel %vm369, %v334, 0
        %v395 = vsel %vm369, %v335, 0
        %v398 = vsel %vm369, %v336, 0
        %v401 = vsel %vm369, %v337, 0
        %v404 = vsel %vm369, %v338, 0
        %v407 = vsel %vm369, %v339, 0
        %v410 = vsel %vm369, %v340, 0
        %v413 = vsel %vm369, %v341, 0
        %v416 = vsel %vm369, %v342, 0
        %v419 = vsel %vm369, %v343, 0
        %v422 = vsel %vm369, %v344, 0
        %v425 = vsel %vm369, %v345, 0
        %v428 = vsel %vm369, %v346, 0
        %v431 = vsel %vm369, %v347, 0
        %v434 = vsel %vm369, %v348, 0
        %v437 = vsel %vm369, %v349, 0
        %v440 = vsel %vm369, %v350, 0
        %v443 = vsel %vm369, %v351, 0
        %v446 = vsel %vm369, %v352, 0
        %v449 = vsel %vm369, %v353, 0
        %v452 = vsel %vm369, %v354, 0
        %v455 = vsel %vm369, %v355, 0
        %v458 = vsel %vm369, %v356, 0
        %v461 = vsel %vm369, %v357, 0
        %v464 = vsel %vm369, %v358, 0
        %v467 = vsel %vm369, %v359, 0
        %v470 = vsel %vm369, %v360, 0
        %v473 = vsel %vm369, %v361, 0
        %v476 = vsel %vm369, %v362, 0
        %v479 = vsel %vm369, %v363, 0
        %v482 = vsel %vm369, %v364, 0
        %v485 = vsel %vm369, %v365, 0
        %v488 = vsel %vm369, %v366, 0
        %490 = vmatprep.subr.mxu0 0.0
        %491 = vmatpush1.msra.mxu0 0.0
        %492 = vmatprep.subr.mxu0 0.0
        %493 = vmatpush1.msra.mxu0 0.0
        %494 = vmatprep.subr.mxu0 0.0
        %495 = vmatpush1.msra.mxu0 0.0
        %496 = vmatprep.subr.mxu0 0.0
        %497 = vmatpush1.msra.mxu0 0.0
        %498 = vmatprep.subr.mxu0 0.0
        %499 = vmatpush1.msra.mxu0 0.0
        %500 = vmatprep.subr.mxu0 0.0
        %501 = vmatpush1.msra.mxu0 0.0
        %502 = vmatprep.subr.mxu0 0.0
        %503 = vmatpush1.msra.mxu0 0.0
        %504 = vmatprep.subr.mxu0 0.0
        %505 = vmatpush1.msra.mxu0 0.0
        %506 = vmatprep.subr.mxu0 0.0
        %507 = vmatpush1.msra.mxu0 0.0
        %508 = vmatprep.subr.mxu0 0.0
        %509 = vmatpush1.msra.mxu0 0.0
        %510 = vmatprep.subr.mxu0 0.0
        %511 = vmatpush1.msra.mxu0 0.0
        %512 = vmatprep.subr.mxu0 0.0
        %513 = vmatpush1.msra.mxu0 0.0
        %514 = vmatprep.subr.mxu0 0.0
        %515 = vmatpush1.msra.mxu0 0.0
        %516 = vmatprep.subr.mxu0 0.0
        %517 = vmatpush1.msra.mxu0 0.0
        %518 = vmatprep.subr.mxu0 0.0
        %519 = vmatpush1.msra.mxu0 %v368
        %520 = vmatprep.subr.mxu0 0.0
        %521 = vmatpush1.msra.mxu0 %v367
        %522 = vmatprep.subr.mxu0 0.0
        %523 = vmatpush2.msra.mxu0 0.0
        %524 = vmatprep.subr.mxu0 0.0
        %525 = vmatpush2.msra.mxu0 0.0
        %526 = vmatprep.subr.mxu0 0.0
        %527 = vmatpush2.msra.mxu0 0.0
        %528 = vmatprep.subr.mxu0 0.0
        %529 = vmatpush2.msra.mxu0 0.0
        %530 = vmatprep.subr.mxu0 0.0
        %531 = vmatpush2.msra.mxu0 0.0
        %532 = vmatprep.subr.mxu0 0.0
        %533 = vmatpush2.msra.mxu0 0.0
        %534 = vmatprep.subr.mxu0 0.0
        %535 = vmatpush2.msra.mxu0 0.0
        %536 = vmatprep.subr.mxu0 0.0
        %537 = vmatpush2.msra.mxu0 0.0
        %538 = vmatprep.subr.mxu0 0.0
        %539 = vmatpush2.msra.mxu0 0.0
        %540 = vmatprep.subr.mxu0 0.0
        %541 = vmatpush2.msra.mxu0 0.0
        %542 = vmatprep.subr.mxu0 0.0
        %543 = vmatpush2.msra.mxu0 0.0
        %544 = vmatprep.subr.mxu0 0.0
        %545 = vmatpush2.msra.mxu0 0.0
        %546 = vmatprep.subr.mxu0 0.0
        %547 = vmatpush2.msra.mxu0 0.0
        %548 = vmatprep.subr.mxu0 0.0
        %549 = vmatpush2.msra.mxu0 0.0
        %550 = vmatprep.subr.mxu0 0.0
        %551 = vmatpush2.msra.mxu0 0.0
        %552 = vmatprep.subr.mxu0 0.0
        %553 = vmatpush2.msra.mxu0 0.0
        %554 = vmatprep.mubr.f32.mxu0 0.0
        %555 = vmatmul.mubr.f32.gmra.mxu0 %v371
        %v556 = vpop.f32.mrf.mxu0
        %v557 = vadd.f32 0.0, %v556
        %v558 = vpop.f32.mrf.mxu0
        %559 = vmatprep.mubr.f32.mxu0 0.0
        %560 = vmatmul.mubr.f32.gmra.mxu0 %v374
        %v561 = vpop.f32.mrf.mxu0
        %v562 = vadd.f32 0.0, %v561
        %v563 = vpop.f32.mrf.mxu0
        %564 = vmatprep.mubr.f32.mxu0 0.0
        %565 = vmatmul.mubr.f32.gmra.mxu0 %v377
        %v566 = vpop.f32.mrf.mxu0
        %v567 = vadd.f32 0.0, %v566
        %v568 = vpop.f32.mrf.mxu0
        %569 = vmatprep.mubr.f32.mxu0 0.0
        %570 = vmatmul.mubr.f32.gmra.mxu0 %v380
        %v571 = vpop.f32.mrf.mxu0
        %v572 = vadd.f32 0.0, %v571
        %v573 = vpop.f32.mrf.mxu0
        %574 = vmatprep.mubr.f32.mxu0 0.0
        %575 = vmatmul.mubr.f32.gmra.mxu0 %v383
        %v576 = vpop.f32.mrf.mxu0
        %v577 = vadd.f32 0.0, %v576
        %v578 = vpop.f32.mrf.mxu0
        %579 = vmatprep.mubr.f32.mxu0 0.0
        %580 = vmatmul.mubr.f32.gmra.mxu0 %v386
        %v581 = vpop.f32.mrf.mxu0
        %v582 = vadd.f32 0.0, %v581
        %v583 = vpop.f32.mrf.mxu0
        %584 = vmatprep.mubr.f32.mxu0 0.0
        %585 = vmatmul.mubr.f32.gmra.mxu0 %v389
        %v586 = vpop.f32.mrf.mxu0
        %v587 = vadd.f32 0.0, %v586
        %v588 = vpop.f32.mrf.mxu0
        %589 = vmatprep.mubr.f32.mxu0 0.0
        %590 = vmatmul.mubr.f32.gmra.mxu0 %v392
        %v591 = vpop.f32.mrf.mxu0
        %v592 = vadd.f32 0.0, %v591
        %v593 = vpop.f32.mrf.mxu0
        %594 = vmatprep.mubr.f32.mxu0 0.0
        %595 = vmatmul.mubr.f32.gmra.mxu0 %v395
        %v596 = vpop.f32.mrf.mxu0
        %v597 = vadd.f32 0.0, %v596
        %v598 = vpop.f32.mrf.mxu0
        %599 = vmatprep.mubr.f32.mxu0 0.0
        %600 = vmatmul.mubr.f32.gmra.mxu0 %v398
        %v601 = vpop.f32.mrf.mxu0
        %v602 = vadd.f32 0.0, %v601
        %v603 = vpop.f32.mrf.mxu0
        %604 = vmatprep.mubr.f32.mxu0 0.0
        %605 = vmatmul.mubr.f32.gmra.mxu0 %v401
        %v606 = vpop.f32.mrf.mxu0
        %v607 = vadd.f32 0.0, %v606
        %v608 = vpop.f32.mrf.mxu0
        %609 = vmatprep.mubr.f32.mxu0 0.0
        %610 = vmatmul.mubr.f32.gmra.mxu0 %v404
        %v611 = vpop.f32.mrf.mxu0
        %v612 = vadd.f32 0.0, %v611
        %v613 = vpop.f32.mrf.mxu0
        %614 = vmatprep.mubr.f32.mxu0 0.0
        %615 = vmatmul.mubr.f32.gmra.mxu0 %v407
        %v616 = vpop.f32.mrf.mxu0
        %v617 = vadd.f32 0.0, %v616
        %v618 = vpop.f32.mrf.mxu0
        %619 = vmatprep.mubr.f32.mxu0 0.0
        %620 = vmatmul.mubr.f32.gmra.mxu0 %v410
        %v621 = vpop.f32.mrf.mxu0
        %v622 = vadd.f32 0.0, %v621
        %v623 = vpop.f32.mrf.mxu0
        %624 = vmatprep.mubr.f32.mxu0 0.0
        %625 = vmatmul.mubr.f32.gmra.mxu0 %v413
        %v626 = vpop.f32.mrf.mxu0
        %v627 = vadd.f32 0.0, %v626
        %v628 = vpop.f32.mrf.mxu0
        %629 = vmatprep.mubr.f32.mxu0 0.0
        %630 = vmatmul.mubr.f32.gmra.mxu0 %v416
        %v631 = vpop.f32.mrf.mxu0
        %v632 = vadd.f32 0.0, %v631
        %v633 = vpop.f32.mrf.mxu0
        %634 = vmatprep.mubr.f32.mxu0 0.0
        %635 = vmatmul.mubr.f32.gmra.mxu0 %v419
        %v636 = vpop.f32.mrf.mxu0
        %v637 = vadd.f32 0.0, %v636
        %v638 = vpop.f32.mrf.mxu0
        %639 = vmatprep.mubr.f32.mxu0 0.0
        %640 = vmatmul.mubr.f32.gmra.mxu0 %v422
        %v641 = vpop.f32.mrf.mxu0
        %v642 = vadd.f32 0.0, %v641
        %v643 = vpop.f32.mrf.mxu0
        %644 = vmatprep.mubr.f32.mxu0 0.0
        %645 = vmatmul.mubr.f32.gmra.mxu0 %v425
        %v646 = vpop.f32.mrf.mxu0
        %v647 = vadd.f32 0.0, %v646
        %v648 = vpop.f32.mrf.mxu0
        %649 = vmatprep.mubr.f32.mxu0 0.0
        %650 = vmatmul.mubr.f32.gmra.mxu0 %v428
        %v651 = vpop.f32.mrf.mxu0
        %v652 = vadd.f32 0.0, %v651
        %v653 = vpop.f32.mrf.mxu0
        %654 = vmatprep.mubr.f32.mxu0 0.0
        %655 = vmatmul.mubr.f32.gmra.mxu0 %v431
        %v656 = vpop.f32.mrf.mxu0
        %v657 = vadd.f32 0.0, %v656
        %v658 = vpop.f32.mrf.mxu0
        %659 = vmatprep.mubr.f32.mxu0 0.0
        %660 = vmatmul.mubr.f32.gmra.mxu0 %v434
        %v661 = vpop.f32.mrf.mxu0
        %v662 = vadd.f32 0.0, %v661
        %v663 = vpop.f32.mrf.mxu0
        %664 = vmatprep.mubr.f32.mxu0 0.0
        %665 = vmatmul.mubr.f32.gmra.mxu0 %v437
        %v666 = vpop.f32.mrf.mxu0
        %v667 = vadd.f32 0.0, %v666
        %v668 = vpop.f32.mrf.mxu0
        %669 = vmatprep.mubr.f32.mxu0 0.0
        %670 = vmatmul.mubr.f32.gmra.mxu0 %v440
        %v671 = vpop.f32.mrf.mxu0
        %v672 = vadd.f32 0.0, %v671
        %v673 = vpop.f32.mrf.mxu0
        %674 = vmatprep.mubr.f32.mxu0 0.0
        %675 = vmatmul.mubr.f32.gmra.mxu0 %v443
        %v676 = vpop.f32.mrf.mxu0
        %v677 = vadd.f32 0.0, %v676
        %v678 = vpop.f32.mrf.mxu0
        %679 = vmatprep.mubr.f32.mxu0 0.0
        %680 = vmatmul.mubr.f32.gmra.mxu0 %v446
        %v681 = vpop.f32.mrf.mxu0
        %v682 = vadd.f32 0.0, %v681
        %v683 = vpop.f32.mrf.mxu0
        %684 = vmatprep.mubr.f32.mxu0 0.0
        %685 = vmatmul.mubr.f32.gmra.mxu0 %v449
        %v686 = vpop.f32.mrf.mxu0
        %v687 = vadd.f32 0.0, %v686
        %v688 = vpop.f32.mrf.mxu0
        %689 = vmatprep.mubr.f32.mxu0 0.0
        %690 = vmatmul.mubr.f32.gmra.mxu0 %v452
        %v691 = vpop.f32.mrf.mxu0
        %v692 = vadd.f32 0.0, %v691
        %v693 = vpop.f32.mrf.mxu0
        %694 = vmatprep.mubr.f32.mxu0 0.0
        %695 = vmatmul.mubr.f32.gmra.mxu0 %v455
        %v696 = vpop.f32.mrf.mxu0
        %v697 = vadd.f32 0.0, %v696
        %v698 = vpop.f32.mrf.mxu0
        %699 = vmatprep.mubr.f32.mxu0 0.0
        %700 = vmatmul.mubr.f32.gmra.mxu0 %v458
        %v701 = vpop.f32.mrf.mxu0
        %v702 = vadd.f32 0.0, %v701
        %v703 = vpop.f32.mrf.mxu0
        %704 = vmatprep.mubr.f32.mxu0 0.0
        %705 = vmatmul.mubr.f32.gmra.mxu0 %v461
        %v706 = vpop.f32.mrf.mxu0
        %v707 = vadd.f32 0.0, %v706
        %v708 = vpop.f32.mrf.mxu0
        %709 = vmatprep.mubr.f32.mxu0 0.0
        %710 = vmatmul.mubr.f32.gmra.mxu0 %v464
        %v711 = vpop.f32.mrf.mxu0
        %v712 = vadd.f32 0.0, %v711
        %v713 = vpop.f32.mrf.mxu0
        %714 = vmatprep.mubr.f32.mxu0 0.0
        %715 = vmatmul.mubr.f32.gmra.mxu0 %v467
        %v716 = vpop.f32.mrf.mxu0
        %v717 = vadd.f32 0.0, %v716
        %v718 = vpop.f32.mrf.mxu0
        %719 = vmatprep.mubr.f32.mxu0 0.0
        %720 = vmatmul.mubr.f32.gmra.mxu0 %v470
        %v721 = vpop.f32.mrf.mxu0
        %v722 = vadd.f32 0.0, %v721
        %v723 = vpop.f32.mrf.mxu0
        %724 = vmatprep.mubr.f32.mxu0 0.0
        %725 = vmatmul.mubr.f32.gmra.mxu0 %v473
        %v726 = vpop.f32.mrf.mxu0
        %v727 = vadd.f32 0.0, %v726
        %v728 = vpop.f32.mrf.mxu0
        %729 = vmatprep.mubr.f32.mxu0 0.0
        %730 = vmatmul.mubr.f32.gmra.mxu0 %v476
        %v731 = vpop.f32.mrf.mxu0
        %v732 = vadd.f32 0.0, %v731
        %v733 = vpop.f32.mrf.mxu0
        %734 = vmatprep.mubr.f32.mxu0 0.0
        %735 = vmatmul.mubr.f32.gmra.mxu0 %v479
        %v736 = vpop.f32.mrf.mxu0
        %v737 = vadd.f32 0.0, %v736
        %v738 = vpop.f32.mrf.mxu0
        %739 = vmatprep.mubr.f32.mxu0 0.0
        %740 = vmatmul.mubr.f32.gmra.mxu0 %v482
        %v741 = vpop.f32.mrf.mxu0
        %v742 = vadd.f32 0.0, %v741
        %v743 = vpop.f32.mrf.mxu0
        %744 = vmatprep.mubr.f32.mxu0 0.0
        %745 = vmatmul.mubr.f32.gmra.mxu0 %v485
        %v746 = vpop.f32.mrf.mxu0
        %v747 = vadd.f32 0.0, %v746
        %v748 = vpop.f32.mrf.mxu0
        %749 = vmatprep.mubr.f32.mxu0 0.0
        %750 = vmatmul.mubr.f32.gmra.mxu0 %v488
        %v751 = vpop.f32.mrf.mxu0
        %v752 = vadd.f32 0.0, %v751
        %v753 = vpop.f32.mrf.mxu0
        %754 = vdwg.mxu0
        %757 = vrot.lane.b32.xlu0 %v567, 16
        %v758 = vpop.permute.xlu0 %757
        %759 = vrot.lane.b32.xlu0 %v572, 16
        %v760 = vpop.permute.xlu0 %759
        %765 = vrot.lane.b32.xlu0 %v577, 32
        %v766 = vpop.permute.xlu0 %765
        %767 = vrot.lane.b32.xlu0 %v582, 32
        %v768 = vpop.permute.xlu0 %767
        %773 = vrot.lane.b32.xlu0 %v587, 48
        %v774 = vpop.permute.xlu0 %773
        %775 = vrot.lane.b32.xlu0 %v592, 48
        %v776 = vpop.permute.xlu0 %775
        %781 = vrot.lane.b32.xlu0 %v597, 64
        %v782 = vpop.permute.xlu0 %781
        %783 = vrot.lane.b32.xlu0 %v602, 64
        %v784 = vpop.permute.xlu0 %783
        %789 = vrot.lane.b32.xlu0 %v607, 80
        %v790 = vpop.permute.xlu0 %789
        %791 = vrot.lane.b32.xlu0 %v612, 80
        %v792 = vpop.permute.xlu0 %791
        %797 = vrot.lane.b32.xlu0 %v617, 96
        %v798 = vpop.permute.xlu0 %797
        %799 = vrot.lane.b32.xlu0 %v622, 96
        %v800 = vpop.permute.xlu0 %799
        %805 = vrot.lane.b32.xlu0 %v627, 112
        %v806 = vpop.permute.xlu0 %805
        %807 = vrot.lane.b32.xlu0 %v632, 112
        %v808 = vpop.permute.xlu0 %807
        %813 = vrot.lane.b32.xlu0 %v647, 16
        %v814 = vpop.permute.xlu0 %813
        %815 = vrot.lane.b32.xlu0 %v652, 16
        %v816 = vpop.permute.xlu0 %815
        %821 = vrot.lane.b32.xlu0 %v657, 32
        %v822 = vpop.permute.xlu0 %821
        %823 = vrot.lane.b32.xlu0 %v662, 32
        %v824 = vpop.permute.xlu0 %823
        %829 = vrot.lane.b32.xlu0 %v667, 48
        %v830 = vpop.permute.xlu0 %829
        %831 = vrot.lane.b32.xlu0 %v672, 48
        %v832 = vpop.permute.xlu0 %831
        %837 = vrot.lane.b32.xlu0 %v677, 64
        %v838 = vpop.permute.xlu0 %837
        %839 = vrot.lane.b32.xlu0 %v682, 64
        %v840 = vpop.permute.xlu0 %839
        %845 = vrot.lane.b32.xlu0 %v687, 80
        %v846 = vpop.permute.xlu0 %845
        %847 = vrot.lane.b32.xlu0 %v692, 80
        %v848 = vpop.permute.xlu0 %847
        %853 = vrot.lane.b32.xlu0 %v697, 96
        %v854 = vpop.permute.xlu0 %853
        %855 = vrot.lane.b32.xlu0 %v702, 96
        %v856 = vpop.permute.xlu0 %855
        %861 = vrot.lane.b32.xlu0 %v707, 112
        %v862 = vpop.permute.xlu0 %861
        %863 = vrot.lane.b32.xlu0 %v712, 112
        %v864 = vpop.permute.xlu0 %863
        %v867 = vsel %vm369, %v557, %v758
        %v868 = vsel %vm369, %v562, %v760
        %vm869 = vcmask 261120
        %v870 = vsel %vm869, %v867, %v766
        %v871 = vsel %vm869, %v868, %v768
        %vm872 = vcmask 392192
        %v873 = vsel %vm872, %v870, %v774
        %v874 = vsel %vm872, %v871, %v776
        %vm875 = vcmask 523264
        %v876 = vsel %vm875, %v873, %v782
        %v877 = vsel %vm875, %v874, %v784
        %vm878 = vcmask 654336
        %v879 = vsel %vm878, %v876, %v790
        %v880 = vsel %vm878, %v877, %v792
        %vm881 = vcmask 785408
        %v882 = vsel %vm881, %v879, %v798
        %v883 = vsel %vm881, %v880, %v800
        %vm884 = vcmask 916480
        %v885 = vsel %vm884, %v882, %v806
        %v886 = vsel %vm884, %v883, %v808
        %v887 = vsel %vm369, %v637, %v814
        %v888 = vsel %vm369, %v642, %v816
        %v889 = vsel %vm869, %v887, %v822
        %v890 = vsel %vm869, %v888, %v824
        %v891 = vsel %vm872, %v889, %v830
        %v892 = vsel %vm872, %v890, %v832
        %v893 = vsel %vm875, %v891, %v838
        %v894 = vsel %vm875, %v892, %v840
        %v895 = vsel %vm878, %v893, %v846
        %v896 = vsel %vm878, %v894, %v848
        %v897 = vsel %vm881, %v895, %v854
        %v898 = vsel %vm881, %v896, %v856
        %v899 = vsel %vm884, %v897, %v862
        %v900 = vsel %vm884, %v898, %v864
        %903 = vrot.lane.b32.xlu0 %v727, 16
        %v904 = vpop.permute.xlu0 %903
        %905 = vrot.lane.b32.xlu0 %v732, 16
        %v906 = vpop.permute.xlu0 %905
        %911 = vrot.lane.b32.xlu0 %v737, 32
        %v912 = vpop.permute.xlu0 %911
        %913 = vrot.lane.b32.xlu0 %v742, 32
        %v914 = vpop.permute.xlu0 %913
        %919 = vrot.lane.b32.xlu0 %v747, 48
        %v920 = vpop.permute.xlu0 %919
        %921 = vrot.lane.b32.xlu0 %v752, 48
        %v922 = vpop.permute.xlu0 %921
        %v925 = vsel %vm369, %v717, %v904
        %v926 = vsel %vm369, %v722, %v906
        %v927 = vsel %vm869, %v925, %v912
        %v928 = vsel %vm869, %v926, %v914
        %v929 = vsel %vm872, %v927, %v920
        %v930 = vsel %vm872, %v928, %v922
        %v931 = vld [vmem:[#allocation8] sm:$0xff]
        %v932 = vld [vmem:[#allocation8 + $0x8] sm:$0xff]
        %v934 = vsel %vm369, %v931, 0
        %v937 = vsel %vm369, %v932, 0
        %939 = vmatprep.subr.mxu0 0.0
        %940 = vmatpush1.msra.mxu0 0.0
        %941 = vmatprep.subr.mxu0 0.0
        %942 = vmatpush1.msra.mxu0 0.0
        %943 = vmatprep.subr.mxu0 0.0
        %944 = vmatpush1.msra.mxu0 0.0
        %945 = vmatprep.subr.mxu0 0.0
        %946 = vmatpush1.msra.mxu0 0.0
        %947 = vmatprep.subr.mxu0 0.0
        %948 = vmatpush1.msra.mxu0 0.0
        %949 = vmatprep.subr.mxu0 0.0
        %950 = vmatpush1.msra.mxu0 0.0
        %951 = vmatprep.subr.mxu0 0.0
        %952 = vmatpush1.msra.mxu0 0.0
        %953 = vmatprep.subr.mxu0 0.0
        %954 = vmatpush1.msra.mxu0 0.0
        %955 = vmatprep.subr.mxu0 0.0
        %956 = vmatpush1.msra.mxu0 0.0
        %957 = vmatprep.subr.mxu0 0.0
        %958 = vmatpush1.msra.mxu0 0.0
        %959 = vmatprep.subr.mxu0 0.0
        %960 = vmatpush1.msra.mxu0 0.0
        %961 = vmatprep.subr.mxu0 0.0
        %962 = vmatpush1.msra.mxu0 0.0
        %963 = vmatprep.subr.mxu0 0.0
        %964 = vmatpush1.msra.mxu0 0.0
        %965 = vmatprep.subr.mxu0 0.0
        %966 = vmatpush1.msra.mxu0 0.0
        %967 = vmatprep.subr.mxu0 %v900
        %968 = vmatpush1.msra.mxu0 %v886
        %969 = vmatprep.subr.mxu0 %v899
        %970 = vmatpush1.msra.mxu0 %v885
        %971 = vmatprep.subr.mxu0 0.0
        %972 = vmatpush2.msra.mxu0 0.0
        %973 = vmatprep.subr.mxu0 0.0
        %974 = vmatpush2.msra.mxu0 0.0
        %975 = vmatprep.subr.mxu0 0.0
        %976 = vmatpush2.msra.mxu0 0.0
        %977 = vmatprep.subr.mxu0 0.0
        %978 = vmatpush2.msra.mxu0 0.0
        %979 = vmatprep.subr.mxu0 0.0
        %980 = vmatpush2.msra.mxu0 0.0
        %981 = vmatprep.subr.mxu0 0.0
        %982 = vmatpush2.msra.mxu0 0.0
        %983 = vmatprep.subr.mxu0 0.0
        %984 = vmatpush2.msra.mxu0 0.0
        %985 = vmatprep.subr.mxu0 0.0
        %986 = vmatpush2.msra.mxu0 0.0
        %987 = vmatprep.subr.mxu0 0.0
        %988 = vmatpush2.msra.mxu0 0.0
        %989 = vmatprep.subr.mxu0 0.0
        %990 = vmatpush2.msra.mxu0 0.0
        %991 = vmatprep.subr.mxu0 0.0
        %992 = vmatpush2.msra.mxu0 0.0
        %993 = vmatprep.subr.mxu0 0.0
        %994 = vmatpush2.msra.mxu0 0.0
        %995 = vmatprep.subr.mxu0 0.0
        %996 = vmatpush2.msra.mxu0 0.0
        %997 = vmatprep.subr.mxu0 0.0
        %998 = vmatpush2.msra.mxu0 0.0
        %999 = vmatprep.subr.mxu0 0.0
        %1000 = vmatpush2.msra.mxu0 0.0
        %1001 = vmatprep.subr.mxu0 0.0
        %1002 = vmatpush2.msra.mxu0 0.0
        %1003 = vmatprep.mubr.f32.mxu0 0.0
        %1004 = vmatmul.mubr.f32.gmra.mxu0 %v934
        %v1005 = vpop.f32.mrf.mxu0
        %v1006 = vadd.f32 0.0, %v1005
        %v1007 = vpop.f32.mrf.mxu0
        %v1008 = vadd.f32 0.0, %v1007
        %1009 = vmatprep.mubr.f32.mxu0 0.0
        %1010 = vmatmul.mubr.f32.gmra.mxu0 %v937
        %v1011 = vpop.f32.mrf.mxu0
        %v1012 = vadd.f32 0.0, %v1011
        %v1013 = vpop.f32.mrf.mxu0
        %v1014 = vadd.f32 0.0, %v1013
        %1015 = vdwg.mxu0
        %1016 = vmatprep.subr.mxu0 0.0
        %1017 = vmatpush1.msra.mxu0 0.0
        %1018 = vmatprep.subr.mxu0 0.0
        %1019 = vmatpush1.msra.mxu0 0.0
        %1020 = vmatprep.subr.mxu0 0.0
        %1021 = vmatpush1.msra.mxu0 0.0
        %1022 = vmatprep.subr.mxu0 0.0
        %1023 = vmatpush1.msra.mxu0 0.0
        %1024 = vmatprep.subr.mxu0 0.0
        %1025 = vmatpush1.msra.mxu0 0.0
        %1026 = vmatprep.subr.mxu0 0.0
        %1027 = vmatpush1.msra.mxu0 0.0
        %1028 = vmatprep.subr.mxu0 0.0
        %1029 = vmatpush1.msra.mxu0 0.0
        %1030 = vmatprep.subr.mxu0 0.0
        %1031 = vmatpush1.msra.mxu0 0.0
        %1032 = vmatprep.subr.mxu0 0.0
        %1033 = vmatpush1.msra.mxu0 0.0
        %1034 = vmatprep.subr.mxu0 0.0
        %1035 = vmatpush1.msra.mxu0 0.0
        %1036 = vmatprep.subr.mxu0 0.0
        %1037 = vmatpush1.msra.mxu0 0.0
        %1038 = vmatprep.subr.mxu0 0.0
        %1039 = vmatpush1.msra.mxu0 0.0
        %1040 = vmatprep.subr.mxu0 0.0
        %1041 = vmatpush1.msra.mxu0 0.0
        %1042 = vmatprep.subr.mxu0 0.0
        %1043 = vmatpush1.msra.mxu0 0.0
        %1044 = vmatprep.subr.mxu0 0.0
        %1045 = vmatpush1.msra.mxu0 %v930
        %1046 = vmatprep.subr.mxu0 0.0
        %1047 = vmatpush1.msra.mxu0 %v929
        %1048 = vmatprep.subr.mxu0 0.0
        %1049 = vmatpush2.msra.mxu0 0.0
        %1050 = vmatprep.subr.mxu0 0.0
        %1051 = vmatpush2.msra.mxu0 0.0
        %1052 = vmatprep.subr.mxu0 0.0
        %1053 = vmatpush2.msra.mxu0 0.0
        %1054 = vmatprep.subr.mxu0 0.0
        %1055 = vmatpush2.msra.mxu0 0.0
        %1056 = vmatprep.subr.mxu0 0.0
        %1057 = vmatpush2.msra.mxu0 0.0
        %1058 = vmatprep.subr.mxu0 0.0
        %1059 = vmatpush2.msra.mxu0 0.0
        %1060 = vmatprep.subr.mxu0 0.0
        %1061 = vmatpush2.msra.mxu0 0.0
        %1062 = vmatprep.subr.mxu0 0.0
        %1063 = vmatpush2.msra.mxu0 0.0
        %1064 = vmatprep.subr.mxu0 0.0
        %1065 = vmatpush2.msra.mxu0 0.0
        %1066 = vmatprep.subr.mxu0 0.0
        %1067 = vmatpush2.msra.mxu0 0.0
        %1068 = vmatprep.subr.mxu0 0.0
        %1069 = vmatpush2.msra.mxu0 0.0
        %1070 = vmatprep.subr.mxu0 0.0
        %1071 = vmatpush2.msra.mxu0 0.0
        %1072 = vmatprep.subr.mxu0 0.0
        %1073 = vmatpush2.msra.mxu0 0.0
        %1074 = vmatprep.subr.mxu0 0.0
        %1075 = vmatpush2.msra.mxu0 0.0
        %1076 = vmatprep.subr.mxu0 0.0
        %1077 = vmatpush2.msra.mxu0 0.0
        %1078 = vmatprep.subr.mxu0 0.0
        %1079 = vmatpush2.msra.mxu0 0.0
        %1080 = vmatprep.mubr.f32.mxu0 0.0
        %1081 = vmatmul.mubr.f32.gmra.mxu0 %v934
        %v1082 = vpop.f32.mrf.mxu0
        %v1083 = vadd.f32 0.0, %v1082
        %v1084 = vpop.f32.mrf.mxu0
        %1085 = vmatprep.mubr.f32.mxu0 0.0
        %1086 = vmatmul.mubr.f32.gmra.mxu0 %v937
        %v1087 = vpop.f32.mrf.mxu0
        %v1088 = vadd.f32 0.0, %v1087
        %v1089 = vpop.f32.mrf.mxu0
        %1090 = vdwg.mxu0
        %v1091 = vmul.f32 %v1006, %v1006
        %v1092 = vmul.f32 %v1012, %v1012
        %1095 = vrot.lane.b32.xlu0 %v1006, 64
        %v1096 = vpop.permute.xlu0 %1095
        %1097 = vrot.lane.b32.xlu0 %v1012, 64
        %v1098 = vpop.permute.xlu0 %1097
        %v1101 = vmul.f32 %v1006, %v1096
        %v1102 = vmul.f32 %v1012, %v1098
        %v1103 = vsub.f32 %v1008, %v1091
        %v1104 = vsub.f32 %v1014, %v1092
        %v1105 = vsub.f32 %v1083, %v1101
        %v1106 = vsub.f32 %v1088, %v1102
        %v1107 = vmul.f32 %v1101, 2.0
        %v1108 = vmul.f32 %v1102, 2.0
        %v1109 = vadd.f32 %v1107, 0.0001
        %v1110 = vadd.f32 %v1108, 0.0001
        %v1111 = vmul.f32 %v1105, 2.0
        %v1112 = vmul.f32 %v1106, 2.0
        %v1113 = vadd.f32 %v1111, 0.0009
        %v1114 = vadd.f32 %v1112, 0.0009
        %v1115 = vmul.f32 %v1109, %v1113
        %v1116 = vmul.f32 %v1110, %v1114
        %1119 = vrot.lane.b32.xlu0 %v1091, 64
        %v1120 = vpop.permute.xlu0 %1119
        %1121 = vrot.lane.b32.xlu0 %v1092, 64
        %v1122 = vpop.permute.xlu0 %1121
        %v1125 = vadd.f32 %v1091, %v1120
        %v1126 = vadd.f32 %v1092, %v1122
        %v1127 = vadd.f32 %v1125, 0.0001
        %v1128 = vadd.f32 %v1126, 0.0001
        %1131 = vrot.lane.b32.xlu0 %v1103, 64
        %v1132 = vpop.permute.xlu0 %1131
        %1133 = vrot.lane.b32.xlu0 %v1104, 64
        %v1134 = vpop.permute.xlu0 %1133
        %v1137 = vadd.f32 %v1103, %v1132
        %v1138 = vadd.f32 %v1104, %v1134
        %v1139 = vadd.f32 %v1137, 0.0009
        %v1140 = vadd.f32 %v1138, 0.0009
        %v1141 = vmul.f32 %v1127, %v1139
        %v1142 = vmul.f32 %v1128, %v1140
        %v1143 = vrcp.pop %v1141
        %v1144 = vrcp.pop %v1142
        %v1145 = vmul.f32 %v1115, %v1143
        %v1146 = vmul.f32 %v1116, %v1144
        %v1147 = vsub.f32 %v327, %v335
        %v1148 = vsub.f32 %v328, %v336
        %v1149 = vsub.f32 %v329, %v337
        %v1150 = vsub.f32 %v330, %v338
        %v1151 = vsub.f32 %v331, %v339
        %v1152 = vsub.f32 %v332, %v340
        %v1153 = vsub.f32 %v333, %v341
        %v1154 = vsub.f32 %v334, %v342
        %v1155 = vand.u32 2147483647, %v1147
        %v1156 = vand.u32 2147483647, %v1148
        %v1157 = vand.u32 2147483647, %v1149
        %v1158 = vand.u32 2147483647, %v1150
        %v1159 = vand.u32 2147483647, %v1151
        %v1160 = vand.u32 2147483647, %v1152
        %v1161 = vand.u32 2147483647, %v1153
        %v1162 = vand.u32 2147483647, %v1154
        %v1163 = vsel %vm369, %v1155, 0.0
        %v1164 = vsel %vm369, %v1156, 0.0
        %v1165 = vadd.f32 %v1163, %v1164
        %v1166 = vsel %vm369, %v1157, 0.0
        %v1167 = vadd.f32 %v1165, %v1166
        %v1168 = vsel %vm369, %v1158, 0.0
        %v1169 = vadd.f32 %v1167, %v1168
        %v1170 = vsel %vm369, %v1159, 0.0
        %v1171 = vadd.f32 %v1169, %v1170
        %v1172 = vsel %vm369, %v1160, 0.0
        %v1173 = vadd.f32 %v1171, %v1172
        %v1174 = vsel %vm369, %v1161, 0.0
        %v1175 = vadd.f32 %v1173, %v1174
        %v1176 = vsel %vm369, %v1162, 0.0
        %v1177 = vadd.f32 %v1175, %v1176
        %1178 = vadd.xlane.f32.xlu0 %v1177
        %v1179 = vpop.xlane.xlu0 %1178
        %v1180 = vrot.slane %v1179, 4
        %v1181 = vadd.f32 %v1179, %v1180
        %v1182 = vrot.slane %v1181, 2
        %v1183 = vadd.f32 %v1181, %v1182
        %v1184 = vrot.slane %v1183, 1
        %v1185 = vadd.f32 %v1183, %v1184
        %s1186 = vtos %v1185
        %v1187 = vstv %s1186
        %v1188 = vadd.f32 %v1187, 0.0
        %1189 = vst [vmem:[%s317] sm:$0xff] %v1188
        %v1190 = vsel %vm875, %v1145, 0.0
        %v1191 = vsel %vm875, %v1146, 0.0
        %v1192 = vadd.f32 %v1190, %v1191
        %1193 = vadd.xlane.f32.xlu0 %v1192
        %v1194 = vpop.xlane.xlu0 %1193
        %v1195 = vrot.slane %v1194, 4
        %v1196 = vadd.f32 %v1194, %v1195
        %v1197 = vrot.slane %v1196, 2
        %v1198 = vadd.f32 %v1196, %v1197
        %v1199 = vrot.slane %v1198, 1
        %v1200 = vadd.f32 %v1198, %v1199
        %s1201 = vtos %v1200
        %v1202 = vstv %s1201
        %v1203 = vadd.f32 %v1202, 0.0
        %1204 = vst [vmem:[%s324] sm:$0xff] %v1203
        %s1205 = sand.u32 %s132, 1
        %s1206 = scalar_lea.sflag [#allocation4], %s1205
        %s1207 = sand.u32 %s132, 1
        %s1208 = smul.addr %s1207, 8
        %s1209 = scalar_lea.vmem [#allocation10], %s1208
        %s1210 = sand.u32 %s158, 1
        %s1211 = scalar_lea.sflag [#allocation12], %s1210
        %s1212 = sand.u32 %s158, 1
        %s1213 = smul.addr %s1212, 8
        %s1214 = scalar_lea.vmem [#allocation11], %s1213
        // Predicated region
        $region53: #{tpu_custom_call.1} parent=35 // pred_check
          %p1215 = pneg %p142
        $region54: #{tpu_custom_call.1} parent=35 // pred_check_branch
          %1217 = sbr.rel (%p1215) target = $region56
        $region55: #{tpu_custom_call.1} parent=35 // pred_region
          %s1219 = ssub.s32 128, 128
          %1220 = vsyncadd %s1206, %s1219
          %s1221 = smul.addr %s30, 128
          %s1222 = scalar_lea.hbm %s4, %s1221
          %s1224 = sshll.u32 %s1209, 4
          %s1225 = int_to_ptr.vmem [resolvable:$true] %s1224
          %1227 = dma.vmem_to_hbm [thread:$0]  %s1225, 128, %s1222, %s1206
        $region56: #{tpu_custom_call.1} parent=35 // pred_fallthru
          _
        // Predicated region
        $region57: #{tpu_custom_call.1} parent=35 // pred_check
          %p1228 = pneg %p168
        $region58: #{tpu_custom_call.1} parent=35 // pred_check_branch
          %1230 = sbr.rel (%p1228) target = $region60
        $region59: #{tpu_custom_call.1} parent=35 // pred_region
          %s1232 = ssub.s32 128, 128
          %1233 = vsyncadd %s1211, %s1232
          %s1234 = smul.addr %s30, 128
          %s1235 = scalar_lea.hbm %s5, %s1234
          %s1237 = sshll.u32 %s1214, 4
          %s1238 = int_to_ptr.vmem [resolvable:$true] %s1237
          %1240 = dma.vmem_to_hbm [thread:$0]  %s1238, 128, %s1235, %s1211
        $region60: #{tpu_custom_call.1} parent=35 // pred_fallthru
          _
      $region36: #{tpu_custom_call.1} parent=5 // pred_fallthru
        _
      %p1241 = scmp.le.s32.totalorder 2, %s25
      // Predicated region
      $region61: #{tpu_custom_call.1} parent=5 // pred_check
        %p1242 = pneg %p1241
      $region62: #{tpu_custom_call.1} parent=5 // pred_check_branch
        %1244 = sbr.rel (%p1242) target = $region64
      $region63: #{tpu_custom_call.1} parent=5 // pred_region
        %s1245 = ssub.s32 %s25, 2
        // Predicated region
        $region65: #{tpu_custom_call.1} parent=63 // pred_check
          %p1246 = pneg %p148
        $region66: #{tpu_custom_call.1} parent=63 // pred_check_branch
          %1248 = sbr.rel (%p1246) target = $region68
        $region67: #{tpu_custom_call.1} parent=63 // pred_region
          %s1249 = sand.u32 %s133, 1
          %s1250 = scalar_lea.sflag [#allocation4], %s1249
          %s1251 = sand.u32 %s133, 1
          %s1252 = smul.addr %s1251, 8
          %s1253 = scalar_lea.vmem [#allocation10], %s1252
          %1254 = dma.done %s1250, 128
        $region68: #{tpu_custom_call.1} parent=63 // pred_fallthru
          _
        // Predicated region
        $region69: #{tpu_custom_call.1} parent=63 // pred_check
          %p1255 = pneg %p174
        $region70: #{tpu_custom_call.1} parent=63 // pred_check_branch
          %1257 = sbr.rel (%p1255) target = $region72
        $region71: #{tpu_custom_call.1} parent=63 // pred_region
          %s1258 = sand.u32 %s159, 1
          %s1259 = scalar_lea.sflag [#allocation12], %s1258
          %s1260 = sand.u32 %s159, 1
          %s1261 = smul.addr %s1260, 8
          %s1262 = scalar_lea.vmem [#allocation11], %s1261
          %1263 = dma.done %s1259, 128
        $region72: #{tpu_custom_call.1} parent=63 // pred_fallthru
          _
      $region64: #{tpu_custom_call.1} parent=5 // pred_fallthru
        _
    $region6: #{tpu_custom_call.1} parent=1 // loop_footer
      %s29 = sadd.s32 1, %s25
    $region7: #{tpu_custom_call.1} parent=1 // loop_footer_branch
      %24 = sbr.rel target = $region3
    $region8: #{tpu_custom_call.1} parent=1 // loop_exit
      _
    %1264 = vsyncpa [#allocation3], 1
    %s1265 = scalar_lea.sflag [#allocation3], 1
    %1266 = vsyncpa %s1265, 1
    %1267 = vsyncpa [#allocation6], 1
    %s1268 = scalar_lea.sflag [#allocation6], 1
    %1269 = vsyncpa %s1268, 1
    %1270 = vsyncpa [#allocation9], 1
    %1271 = vsyncpa [#allocation4], 1
    %s1272 = scalar_lea.sflag [#allocation4], 1
    %1273 = vsyncpa %s1272, 1
    %1274 = vsyncpa [#allocation12], 1
    %s1275 = scalar_lea.sflag [#allocation12], 1
    %1276 = vsyncpa %s1275, 1

</llo_original>
